<compile_context>
chip_gen: v7x
topology: tpu7x:2x2x1
jax: 0.10.0
libtpu: 0.0.40
codegen_flags: <defaults>
</compile_context>

<pallas_src>
import jax
import jax.numpy as jnp
from jax.experimental import pallas as pl
from jax.experimental.pallas import tpu as pltpu


def _make_loss_kernel(batch_size, tile_rows, steps_per_chunk, needs_mask):
    inv_b = 1.0 / float(batch_size)

    def kernel(sel_ref, w_ref, pred_ref, targ_ref, out_ref):
        c = pl.program_id(0)  # chunk axis ("parallel", megacore on v7x)
        i = pl.program_id(1)  # batch-tile axis ("arbitrary", reduction)

        # Upcast inside the kernel (supports bf16 inputs without an extra
        # wrapper-side HBM pass).
        diff = pred_ref[...].astype(jnp.float32) - targ_ref[...].astype(jnp.float32)
        sq = diff * diff                                             # (TB, D)

        # Per-group sum of squares on the MXU: (TB, D) @ (D, 3) -> (TB, 3).
        group_sq = jnp.dot(sq, sel_ref[...], preferred_element_type=jnp.float32)

        # One EUP sqrt pass over all three groups at once.
        group_n = jnp.sqrt(group_sq)                                 # (TB, 3)

        # Weight + per-row sum fused into one more MXU op: (TB,3)@(3,1)->(TB,1).
        weighted = jnp.dot(group_n, w_ref[...], preferred_element_type=jnp.float32)

        if needs_mask:
            row = (jax.lax.broadcasted_iota(jnp.int32, weighted.shape, 0)
                   + (c * steps_per_chunk + i) * tile_rows)
            weighted = jnp.where(row < batch_size, weighted, 0.0)

        partial = jnp.sum(weighted) * inv_b

        @pl.when(i == 0)
        def _():
            out_ref[0, 0] = partial

        @pl.when(i > 0)
        def _():
            out_ref[0, 0] = out_ref[0, 0] + partial

    return kernel


def self_def_loss(prediction, target, weight_vec, *, max_tile_rows=4096):
    """prediction, target: (B, D>=9) float32/bf16; weight_vec: (3,) -> scalar loss."""
    B, D = prediction.shape
    assert D >= 9, "Self_def_loss expects at least 9 state columns"
    weight_vec = weight_vec.astype(jnp.float32)

    # Constant (D, 3) one-hot selector: column d feeds group d // 3 for d < 9;
    # columns >= 9 are all-zero (ignored), matching the PyTorch slicing.
    col = jnp.arange(D, dtype=jnp.int32)[:, None]
    grp = jnp.arange(3, dtype=jnp.int32)[None, :]
    selector = ((col >= 3 * grp) & (col < 3 * grp + 3)).astype(jnp.float32)

    w_col = weight_vec.reshape(3, 1)  # (3, 1) for the fused weight/sum matmul

    # Batch tile: full B when small (always legal), else a multiple-of-8 tile
    # sized well under scoped VMEM even with double buffering
    # (4 bufs * 4096 * D * 4B ~= 0.6 MiB for D=9).
    TB = B if B <= max_tile_rows else max_tile_rows
    total_steps = pl.cdiv(B, TB)
    # Leading "parallel" chunk axis: lets v7x shard across its 2 TensorCores.
    NC = 2 if (total_steps % 2 == 0) else 1
    steps = total_steps // NC
    needs_mask = (B % TB) != 0

    kernel = _make_loss_kernel(B, TB, steps, needs_mask)

    out = pl.pallas_call(
        kernel,
        out_shape=jax.ShapeDtypeStruct((NC, 1), jnp.float32),
        grid_spec=pltpu.PrefetchScalarGridSpec(
            num_scalar_prefetch=0,
            grid=(NC, steps),
            in_specs=[
                pl.BlockSpec((D, 3), lambda c, i: (0, 0)),            # selector (resident)
                pl.BlockSpec((3, 1), lambda c, i: (0, 0)),            # weights  (resident)
                pl.BlockSpec((TB, D), lambda c, i: (c * steps + i, 0)),  # prediction tile
                pl.BlockSpec((TB, D), lambda c, i: (c * steps + i, 0)),  # target tile
            ],
            out_specs=pl.BlockSpec((1, 1), lambda c, i: (c, 0),
                                   memory_space=pltpu.SMEM),
        ),
        compiler_params=pltpu.CompilerParams(
            dimension_semantics=("parallel", "arbitrary")),
    )(selector, w_col, prediction, target)

    # Tiny host-side add of per-chunk partials (scalar when NC == 1).
    return jnp.sum(out)


def _reference(prediction, target, weight_vec):
    prediction = prediction.astype(jnp.float32)
    target = target.astype(jnp.float32)
    pos = prediction[:, 0:3] - target[:, 0:3]
    spd = prediction[:, 3:6] - target[:, 3:6]
    acc = prediction[:, 6:9] - target[:, 6:9]
    n = (jnp.linalg.norm(pos, axis=1, keepdims=True) * weight_vec[0]
         + jnp.linalg.norm(spd, axis=1, keepdims=True) * weight_vec[1]
         + jnp.linalg.norm(acc, axis=1, keepdims=True) * weight_vec[2])
    return jnp.mean(n)


if __name__ == "__main__":
    key = jax.random.PRNGKey(0)
    weight_vec = jnp.array([1.0, 0.5, 0.25], dtype=jnp.float32)

    # Primary small case matching the module: batch of 8, 9 state dims.
    k1, k2 = jax.random.split(key)
    B, D = 8, 9
    prediction = jax.random.normal(k1, (B, D), dtype=jnp.float32)
    target = jax.random.normal(k2, (B, D), dtype=jnp.float32)

    loss = self_def_loss(prediction, target, weight_vec)
    jax.block_until_ready(loss)
    ref = _reference(prediction, target, weight_vec)
    assert jnp.allclose(loss, ref, rtol=1e-5, atol=1e-5), (loss, ref)

    # Extra small checks exercising the grid, tail masking, and the
    # dual-chunk ("parallel") path by shrinking the tile size.
    for Bx, tile in ((20, 8), (32, 8)):
        ka, kb = jax.random.split(jax.random.PRNGKey(Bx))
        p = jax.random.normal(ka, (Bx, D), dtype=jnp.float32)
        t = jax.random.normal(kb, (Bx, D), dtype=jnp.float32)
        got = self_def_loss(p, t, weight_vec, max_tile_rows=tile)
        jax.block_until_ready(got)
        want = _reference(p, t, weight_vec)
        assert jnp.allclose(got, want, rtol=1e-5, atol=1e-5), (Bx, got, want)

    print("KERNEL_OK")
</pallas_src>

<mosaic_0001>
module attributes {stable_mosaic.version = 11 : i64} {
  func.func @kernel(%arg0: i32, %arg1: i32, %arg2: memref<9x3xf32, #tpu.memory_space<vmem>>, %arg3: memref<3x1xf32, #tpu.memory_space<vmem>>, %arg4: memref<8x9xf32, #tpu.memory_space<vmem>>, %arg5: memref<8x9xf32, #tpu.memory_space<vmem>>, %arg6: memref<1x1xf32, #tpu.memory_space<smem>>) attributes {dimension_semantics = [#tpu.dimension_semantics<parallel>, #tpu.dimension_semantics<arbitrary>], iteration_bounds = array<i64: 1, 1>, scalar_prefetch = 0 : i64, scratch_operands = 0 : i64, tpu.core_type = #tpu.core_type<tc>, window_params = [{pipeline_mode = #tpu.pipeline_mode<synchronous>, transform_indices = @transform_0, window_bounds = array<i64: 9, 3>}, {pipeline_mode = #tpu.pipeline_mode<synchronous>, transform_indices = @transform_1, window_bounds = array<i64: 3, 1>}, {transform_indices = @transform_2, window_bounds = array<i64: 8, 9>}, {transform_indices = @transform_3, window_bounds = array<i64: 8, 9>}, {transform_indices = @transform_4, window_bounds = array<i64: 1, 1>}]} {
    %c0 = arith.constant 0 : index
    %c0_0 = arith.constant 0 : index
    %0 = vector.load %arg4[%c0, %c0_0] : memref<8x9xf32, #tpu.memory_space<vmem>>, vector<8x9xf32>
    %c0_1 = arith.constant 0 : index
    %c0_2 = arith.constant 0 : index
    %1 = vector.load %arg5[%c0_1, %c0_2] : memref<8x9xf32, #tpu.memory_space<vmem>>, vector<8x9xf32>
    %2 = arith.subf %0, %1 : vector<8x9xf32>
    %3 = arith.mulf %2, %2 : vector<8x9xf32>
    %c0_3 = arith.constant 0 : index
    %c0_4 = arith.constant 0 : index
    %4 = vector.load %arg2[%c0_3, %c0_4] : memref<9x3xf32, #tpu.memory_space<vmem>>, vector<9x3xf32>
    %cst = arith.constant dense<0.000000e+00> : vector<8x3xf32>
    %5 = tpu.matmul %3, %4, %cst {dimension_numbers = #tpu.dot_dimension_numbers<[1], [0], [0], [1], [0, 0, 1, 1], [], []>} : vector<8x9xf32>, vector<9x3xf32>, vector<8x3xf32> -> vector<8x3xf32>
    %6 = math.sqrt %5 : vector<8x3xf32>
    %c0_5 = arith.constant 0 : index
    %c0_6 = arith.constant 0 : index
    %7 = vector.load %arg3[%c0_5, %c0_6] : memref<3x1xf32, #tpu.memory_space<vmem>>, vector<3x1xf32>
    %cst_7 = arith.constant dense<0.000000e+00> : vector<8x1xf32>
    %8 = tpu.matmul %6, %7, %cst_7 {dimension_numbers = #tpu.dot_dimension_numbers<[1], [0], [0], [1], [0, 0, 1, 1], [], []>} : vector<8x3xf32>, vector<3x1xf32>, vector<8x1xf32> -> vector<8x1xf32>
    %9 = vector.shape_cast %8 : vector<8x1xf32> to vector<1x8x1xf32>
    %cst_8 = arith.constant dense<0.000000e+00> : vector<1xf32>
    %10 = vector.multi_reduction <add>, %9, %cst_8 [1, 2] : vector<1x8x1xf32> to vector<1xf32>
    %11 = vector.shape_cast %10 : vector<1xf32> to vector<1x1x1xf32>
    %12 = vector.extract %11[0, 0, 0] : f32 from vector<1x1x1xf32>
    %cst_9 = arith.constant 1.250000e-01 : f32
    %13 = arith.mulf %12, %cst_9 : f32
    %c0_i32 = arith.constant 0 : i32
    %14 = arith.cmpi eq, %arg1, %c0_i32 : i32
    %15 = arith.extui %14 : i1 to i32
    %c0_i32_10 = arith.constant 0 : i32
    %16 = arith.cmpi ne, %15, %c0_i32_10 : i32
    scf.if %16 {
      %c0_13 = arith.constant 0 : index
      %c0_14 = arith.constant 0 : index
      %20 = memref.load %arg6[%c0_13, %c0_14] : memref<1x1xf32, #tpu.memory_space<smem>>
      memref.store %13, %arg6[%c0_13, %c0_14] : memref<1x1xf32, #tpu.memory_space<smem>>
    } else {
    }
    %c0_i32_11 = arith.constant 0 : i32
    %17 = arith.cmpi sgt, %arg1, %c0_i32_11 : i32
    %18 = arith.extui %17 : i1 to i32
    %c0_i32_12 = arith.constant 0 : i32
    %19 = arith.cmpi ne, %18, %c0_i32_12 : i32
    scf.if %19 {
      %c0_13 = arith.constant 0 : index
      %c0_14 = arith.constant 0 : index
      %20 = memref.load %arg6[%c0_13, %c0_14] : memref<1x1xf32, #tpu.memory_space<smem>>
      %21 = arith.addf %20, %13 : f32
      %c0_15 = arith.constant 0 : index
      %c0_16 = arith.constant 0 : index
      %22 = memref.load %arg6[%c0_15, %c0_16] : memref<1x1xf32, #tpu.memory_space<smem>>
      memref.store %21, %arg6[%c0_15, %c0_16] : memref<1x1xf32, #tpu.memory_space<smem>>
    } else {
    }
    return
  }
  func.func @transform_0(%arg0: i32, %arg1: i32) -> (i32, i32) {
    %c0_i32 = arith.constant 0 : i32
    %c0_i32_0 = arith.constant 0 : i32
    %c0_i32_1 = arith.constant 0 : i32
    return %c0_i32, %c0_i32_0 : i32, i32
  }
  func.func @transform_1(%arg0: i32, %arg1: i32) -> (i32, i32) {
    %c0_i32 = arith.constant 0 : i32
    %c0_i32_0 = arith.constant 0 : i32
    %c0_i32_1 = arith.constant 0 : i32
    return %c0_i32, %c0_i32_0 : i32, i32
  }
  func.func @transform_2(%arg0: i32, %arg1: i32) -> (i32, i32) {
    %c1_i32 = arith.constant 1 : i32
    %0 = arith.muli %arg0, %c1_i32 : i32
    %1 = arith.addi %0, %arg1 : i32
    %c0_i32 = arith.constant 0 : i32
    %c0_i32_0 = arith.constant 0 : i32
    return %1, %c0_i32 : i32, i32
  }
  func.func @transform_3(%arg0: i32, %arg1: i32) -> (i32, i32) {
    %c1_i32 = arith.constant 1 : i32
    %0 = arith.muli %arg0, %c1_i32 : i32
    %1 = arith.addi %0, %arg1 : i32
    %c0_i32 = arith.constant 0 : i32
    %c0_i32_0 = arith.constant 0 : i32
    return %1, %c0_i32 : i32, i32
  }
  func.func @transform_4(%arg0: i32, %arg1: i32) -> (i32, i32) {
    %c0_i32 = arith.constant 0 : i32
    %c0_i32_0 = arith.constant 0 : i32
    return %arg0, %c0_i32 : i32, i32
  }
}

</mosaic_0001>

<llo_original>
// kernel: tpu_custom_call.1
$region0: #{tpu_custom_call.1}
  #allocation0 [shape = 'u32[]', space=smem, size = 0x4, offset = 0x4, fixed_abs, tag = 'smem constant byte address 0x4 - core index']
  #allocation1 [shape = 'u32[144,128]{1,0:T(1,128)}', space=vmem, size = 0x12000, scoped, tag = 'internal scratch']
  %s0 = inlined_call_operand.vmem [shape: f32[9,3], index: 0, kind: input, shape index: {}]
  %s1 = inlined_call_operand.vmem [shape: f32[3,1], index: 1, kind: input, shape index: {}]
  %s2 = inlined_call_operand.vmem [shape: f32[8,9], index: 2, kind: input, shape index: {}]
  %s3 = inlined_call_operand.vmem [shape: f32[8,9], index: 3, kind: input, shape index: {}]
  %s4 = inlined_call_operand.hbm [shape: f32[1,1], index: 4, kind: output, shape index: {}]
  %s5 = sld [smem:[#allocation0]]
  $region34: #{tpu_custom_call.1} parent=0
    _
  %s7 = ssub.s32 1, %s5
  %s8 = scalar_select 0, %s7, %s5
  $region1: #{tpu_custom_call.1} parent=0
    #allocation2 [shape = 'u8[512]{0}', space=smem, size = 0x200, scoped, tag = 'output window, operand 0, single buffered']
    #allocation3 [shape = 's32[1]{0}', space=sflag, size = 0x4, scoped, tag = 'scoped memory for tpu_custom_call.1']
    %9 = vsyncpa [#allocation3], 0
    // Predicated region
    $region2: #{tpu_custom_call.1} parent=1 // pred_check
      _
    $region3: #{tpu_custom_call.1} parent=1 // pred_check_branch
      %11 = sbr.rel (0) target = $region5
    $region4: #{tpu_custom_call.1} parent=1 // pred_region
      _
    $region5: #{tpu_custom_call.1} parent=1 // pred_fallthru
      _
    // Predicated region
    $region6: #{tpu_custom_call.1} parent=1 // pred_check
      _
    $region7: #{tpu_custom_call.1} parent=1 // pred_check_branch
      %13 = sbr.rel (0) target = $region9
    $region8: #{tpu_custom_call.1} parent=1 // pred_region
      _
    $region9: #{tpu_custom_call.1} parent=1 // pred_fallthru
      _
    // Predicated region
    $region10: #{tpu_custom_call.1} parent=1 // pred_check
      _
    $region11: #{tpu_custom_call.1} parent=1 // pred_check_branch
      %15 = sbr.rel (0) target = $region13
    $region12: #{tpu_custom_call.1} parent=1 // pred_region
      %s16 = sadd.s32 0, 0
      %p17 = scmp.lt.s32.totalorder %s16, 0
      %s18 = scalar_select %p17, %s16, 0
      %s19 = smul.addr %s18, 8
      %s20 = scalar_lea.vmem %s2, %s19
      %s21 = sadd.s32 0, 0
    $region13: #{tpu_custom_call.1} parent=1 // pred_fallthru
      _
    // Predicated region
    $region14: #{tpu_custom_call.1} parent=1 // pred_check
      _
    $region15: #{tpu_custom_call.1} parent=1 // pred_check_branch
      %23 = sbr.rel (0) target = $region17
    $region16: #{tpu_custom_call.1} parent=1 // pred_region
      %s24 = sadd.s32 0, 0
      %p25 = scmp.lt.s32.totalorder %s24, 0
      %s26 = scalar_select %p25, %s24, 0
      %s27 = smul.addr %s26, 8
      %s28 = scalar_lea.vmem %s3, %s27
      %s29 = sadd.s32 0, 0
    $region17: #{tpu_custom_call.1} parent=1 // pred_fallthru
      _
    %s30 = sadd.s32 0, 0
    %p31 = scmp.lt.s32.totalorder %s30, 0
    %s32 = scalar_select %p31, %s30, 0
    %s33 = smul.addr %s32, 8
    %s34 = scalar_lea.vmem %s2, %s33
    %s35 = sadd.s32 0, 0
    %p36 = scmp.lt.s32.totalorder %s35, 0
    %s37 = scalar_select %p36, %s35, 0
    %s38 = smul.addr %s37, 8
    %s39 = scalar_lea.vmem %s3, %s38
    %s40 = sadd.s32 0, 0
    %p41 = scmp.lt.s32.totalorder %s40, 0
    %s42 = scalar_select %p41, %s40, 0
    %s43 = smul.addr %s42, 8
    %s44 = scalar_lea.vmem %s2, %s43
    %s45 = sadd.s32 0, 0
    %s46 = sadd.s32 0, 0
    %p47 = scmp.lt.s32.totalorder %s46, 0
    %s48 = scalar_select %p47, %s46, 0
    %s49 = smul.addr %s48, 8
    %s50 = scalar_lea.vmem %s3, %s49
    %s51 = sadd.s32 0, 0
    %v52 = vld [vmem:[%s44] sm:$0xff]
    %v53 = vld [vmem:[%s50] sm:$0xff]
    %v54 = vsub.f32 %v52, %v53
    %v55 = vmul.f32 %v54, %v54
    %v56 = vld [vmem:[%s0] sm:$0xff]
    %v57 = vld [vmem:[%s0 + $0x8] sm:$0x1]
    %vm58 = vcmask 72704
    %v60 = vsel %vm58, %v55, 0
    %vm62 = vcmask 1040384
    %v64 = vsel %vm62, %v57, 0
    %66 = vmatprep.subr.mxu0 0.0
    %67 = vmatpush1.msra.mxu0 %v56
    %68 = vmatprep.subr.mxu0 0.0
    %69 = vmatpush1.msra.mxu0 %v64
    %70 = vmatprep.subr.mxu0 0.0
    %71 = vmatpush1.msra.mxu0 0.0
    %72 = vmatprep.subr.mxu0 0.0
    %73 = vmatpush1.msra.mxu0 0.0
    %74 = vmatprep.subr.mxu0 0.0
    %75 = vmatpush1.msra.mxu0 0.0
    %76 = vmatprep.subr.mxu0 0.0
    %77 = vmatpush1.msra.mxu0 0.0
    %78 = vmatprep.subr.mxu0 0.0
    %79 = vmatpush1.msra.mxu0 0.0
    %80 = vmatprep.subr.mxu0 0.0
    %81 = vmatpush1.msra.mxu0 0.0
    %82 = vmatprep.subr.mxu0 0.0
    %83 = vmatpush1.msra.mxu0 0.0
    %84 = vmatprep.subr.mxu0 0.0
    %85 = vmatpush1.msra.mxu0 0.0
    %86 = vmatprep.subr.mxu0 0.0
    %87 = vmatpush1.msra.mxu0 0.0
    %88 = vmatprep.subr.mxu0 0.0
    %89 = vmatpush1.msra.mxu0 0.0
    %90 = vmatprep.subr.mxu0 0.0
    %91 = vmatpush1.msra.mxu0 0.0
    %92 = vmatprep.subr.mxu0 0.0
    %93 = vmatpush1.msra.mxu0 0.0
    %94 = vmatprep.subr.mxu0 0.0
    %95 = vmatpush1.msra.mxu0 0.0
    %96 = vmatprep.subr.mxu0 0.0
    %97 = vmatpush1.msra.mxu0 0.0
    %98 = vmatprep.subr.mxu0 0.0
    %99 = vmatpush1.msra.mxu0 0.0
    %100 = vmatprep.subr.mxu0 0.0
    %101 = vmatpush1.msra.mxu0 0.0
    %102 = vmatprep.subr.mxu0 0.0
    %103 = vmatpush1.msra.mxu0 0.0
    %104 = vmatprep.subr.mxu0 0.0
    %105 = vmatpush1.msra.mxu0 0.0
    %106 = vmatprep.subr.mxu0 0.0
    %107 = vmatpush1.msra.mxu0 0.0
    %108 = vmatprep.subr.mxu0 0.0
    %109 = vmatpush1.msra.mxu0 0.0
    %110 = vmatprep.subr.mxu0 0.0
    %111 = vmatpush1.msra.mxu0 0.0
    %112 = vmatprep.subr.mxu0 0.0
    %113 = vmatpush1.msra.mxu0 0.0
    %114 = vmatprep.subr.mxu0 0.0
    %115 = vmatpush1.msra.mxu0 0.0
    %116 = vmatprep.subr.mxu0 0.0
    %117 = vmatpush1.msra.mxu0 0.0
    %118 = vmatprep.subr.mxu0 0.0
    %119 = vmatpush1.msra.mxu0 0.0
    %120 = vmatprep.subr.mxu0 0.0
    %121 = vmatpush1.msra.mxu0 0.0
    %122 = vmatprep.subr.mxu0 0.0
    %123 = vmatpush1.msra.mxu0 0.0
    %124 = vmatprep.subr.mxu0 0.0
    %125 = vmatpush1.msra.mxu0 0.0
    %126 = vmatprep.subr.mxu0 0.0
    %127 = vmatpush1.msra.mxu0 0.0
    %128 = vmatprep.subr.mxu0 0.0
    %129 = vmatpush1.msra.mxu0 0.0
    %130 = vmatprep.mubr.f32.mxu0 0.0
    %131 = vmatmul.mubr.f32.gmra.mrb[0].mxu0 %v60
    %v132 = vpop.f32.mrb[0].mxu0
    %v133 = vadd.f32 0.0, %v132
    %v134 = vpop.f32.mrb[0].mxu0
    %135 = vdwg.mxu0
    %v136 = vrsqrt.pop %v133
    %v137 = vmul.f32 %v133, %v136
    %vm138 = vcmp.eq.f32.partialorder %v133, inf
    %v139 = vsel %vm138, %v133, %v137
    %vm140 = vcmp.eq.f32.partialorder %v133, 0.0
    %v141 = vand.u32 %v133, 2147483648
    %v142 = vsel %vm140, %v141, %v139
    %v143 = vld [vmem:[%s1] sm:$0x7]
    %vm144 = vcmask 23552
    %v146 = vsel %vm144, %v142, 0
    %vm148 = vcmask 1042432
    %v150 = vsel %vm148, %v143, 0
    %152 = vmatprep.subr.mxu0 0.0
    %153 = vmatpush1.msra.mxu0 %v150
    %154 = vmatprep.subr.mxu0 0.0
    %155 = vmatpush1.msra.mxu0 0.0
    %156 = vmatprep.subr.mxu0 0.0
    %157 = vmatpush1.msra.mxu0 0.0
    %158 = vmatprep.subr.mxu0 0.0
    %159 = vmatpush1.msra.mxu0 0.0
    %160 = vmatprep.subr.mxu0 0.0
    %161 = vmatpush1.msra.mxu0 0.0
    %162 = vmatprep.subr.mxu0 0.0
    %163 = vmatpush1.msra.mxu0 0.0
    %164 = vmatprep.subr.mxu0 0.0
    %165 = vmatpush1.msra.mxu0 0.0
    %166 = vmatprep.subr.mxu0 0.0
    %167 = vmatpush1.msra.mxu0 0.0
    %168 = vmatprep.subr.mxu0 0.0
    %169 = vmatpush1.msra.mxu0 0.0
    %170 = vmatprep.subr.mxu0 0.0
    %171 = vmatpush1.msra.mxu0 0.0
    %172 = vmatprep.subr.mxu0 0.0
    %173 = vmatpush1.msra.mxu0 0.0
    %174 = vmatprep.subr.mxu0 0.0
    %175 = vmatpush1.msra.mxu0 0.0
    %176 = vmatprep.subr.mxu0 0.0
    %177 = vmatpush1.msra.mxu0 0.0
    %178 = vmatprep.subr.mxu0 0.0
    %179 = vmatpush1.msra.mxu0 0.0
    %180 = vmatprep.subr.mxu0 0.0
    %181 = vmatpush1.msra.mxu0 0.0
    %182 = vmatprep.subr.mxu0 0.0
    %183 = vmatpush1.msra.mxu0 0.0
    %184 = vmatprep.subr.mxu0 0.0
    %185 = vmatpush1.msra.mxu0 0.0
    %186 = vmatprep.subr.mxu0 0.0
    %187 = vmatpush1.msra.mxu0 0.0
    %188 = vmatprep.subr.mxu0 0.0
    %189 = vmatpush1.msra.mxu0 0.0
    %190 = vmatprep.subr.mxu0 0.0
    %191 = vmatpush1.msra.mxu0 0.0
    %192 = vmatprep.subr.mxu0 0.0
    %193 = vmatpush1.msra.mxu0 0.0
    %194 = vmatprep.subr.mxu0 0.0
    %195 = vmatpush1.msra.mxu0 0.0
    %196 = vmatprep.subr.mxu0 0.0
    %197 = vmatpush1.msra.mxu0 0.0
    %198 = vmatprep.subr.mxu0 0.0
    %199 = vmatpush1.msra.mxu0 0.0
    %200 = vmatprep.subr.mxu0 0.0
    %201 = vmatpush1.msra.mxu0 0.0
    %202 = vmatprep.subr.mxu0 0.0
    %203 = vmatpush1.msra.mxu0 0.0
    %204 = vmatprep.subr.mxu0 0.0
    %205 = vmatpush1.msra.mxu0 0.0
    %206 = vmatprep.subr.mxu0 0.0
    %207 = vmatpush1.msra.mxu0 0.0
    %208 = vmatprep.subr.mxu0 0.0
    %209 = vmatpush1.msra.mxu0 0.0
    %210 = vmatprep.subr.mxu0 0.0
    %211 = vmatpush1.msra.mxu0 0.0
    %212 = vmatprep.subr.mxu0 0.0
    %213 = vmatpush1.msra.mxu0 0.0
    %214 = vmatprep.subr.mxu0 0.0
    %215 = vmatpush1.msra.mxu0 0.0
    %216 = vmatprep.mubr.f32.mxu0 0.0
    %217 = vmatmul.mubr.f32.gmra.mrb[0].mxu0 %v146
    %v218 = vpop.f32.mrb[0].mxu0
    %v219 = vadd.f32 0.0, %v218
    %v220 = vpop.f32.mrb[0].mxu0
    %221 = vdwg.mxu0
    %vm222 = vcmask 7168
    %v223 = vsel %vm222, %v219, 0.0
    %224 = vadd.xlane.f32.xlu0 %v223
    %v225 = vpop.xlane.xlu0 %224
    %v226 = vrot.slane %v225, 4
    %v227 = vadd.f32 %v225, %v226
    %v228 = vrot.slane %v227, 2
    %v229 = vadd.f32 %v227, %v228
    %v230 = vrot.slane %v229, 1
    %v231 = vadd.f32 %v229, %v230
    %s232 = vtos %v231
    %s233 = smul.f32 %s232, 0.125
    %p234 = scmp.eq.s32.totalorder 0, 0
    // Predicated region
    $region18: #{tpu_custom_call.1} parent=1 // pred_check
      %p235 = pneg %p234
    $region19: #{tpu_custom_call.1} parent=1 // pred_check_branch
      %237 = sbr.rel (%p235) target = $region21
    $region20: #{tpu_custom_call.1} parent=1 // pred_region
      %s238 = scalar_lea.smem [#allocation2], 0
      %239 = sst [smem:[%s238]] %s233
    $region21: #{tpu_custom_call.1} parent=1 // pred_fallthru
      _
    %p240 = scmp.gt.s32.totalorder 0, 0
    // Predicated region
    $region22: #{tpu_custom_call.1} parent=1 // pred_check
      %p241 = pneg %p240
    $region23: #{tpu_custom_call.1} parent=1 // pred_check_branch
      %243 = sbr.rel (%p241) target = $region25
    $region24: #{tpu_custom_call.1} parent=1 // pred_region
      %s244 = sld [smem:[#allocation2]]
      %s245 = sadd.f32 %s244, %s233
      %s246 = scalar_lea.smem [#allocation2], 0
      %247 = sst [smem:[%s246]] %s245
    $region25: #{tpu_custom_call.1} parent=1 // pred_fallthru
      _
    // Predicated region
    $region26: #{tpu_custom_call.1} parent=1 // pred_check
      _
    $region27: #{tpu_custom_call.1} parent=1 // pred_check_branch
      %249 = sbr.rel (0) target = $region29
    $region28: #{tpu_custom_call.1} parent=1 // pred_region
      %s251 = ssub.s32 16, 16
      %252 = vsyncadd [#allocation3], %s251
      %255 = dma.smem_to_hbm [#allocation2], 16, %s4, [#allocation3]
    $region29: #{tpu_custom_call.1} parent=1 // pred_fallthru
      _
    // Predicated region
    $region30: #{tpu_custom_call.1} parent=1 // pred_check
      _
    $region31: #{tpu_custom_call.1} parent=1 // pred_check_branch
      %257 = sbr.rel (0) target = $region33
    $region32: #{tpu_custom_call.1} parent=1 // pred_region
      %258 = dma.done [#allocation3], 16
    $region33: #{tpu_custom_call.1} parent=1 // pred_fallthru
      _
    %259 = sfence
    %260 = vsyncpa [#allocation3], 1

</llo_original>
